<compile_context>
chip_gen: v7x
topology: tpu7x:2x2x1
jax: 0.10.0
libtpu: 0.0.40
codegen_flags: <defaults>
</compile_context>

<pallas_src>
import math
import functools

import jax
import jax.numpy as jnp
from jax.experimental import pallas as pl
from jax.experimental.pallas import tpu as pltpu


def _cdiv(a, b):
    return (a + b - 1) // b


def _round_up(a, b):
    return _cdiv(a, b) * b


# ---------------------------------------------------------------------------
# Kernels
# ---------------------------------------------------------------------------
def _linear_kernel_fullk(x_ref, w_ref, o_ref):
    """Whole K resident in VMEM: one MXU matmul per output tile, single store."""
    o_ref[...] = jnp.dot(
        x_ref[...], w_ref[...], preferred_element_type=jnp.float32
    ).astype(o_ref.dtype)


def _linear_kernel_ktiled(x_ref, w_ref, o_ref, acc_ref):
    """K walked by grid axis 2; f32 accumulator in VMEM scratch."""
    @pl.when(pl.program_id(2) == 0)
    def _():
        acc_ref[...] = jnp.zeros_like(acc_ref)

    acc_ref[...] += jnp.dot(
        x_ref[...], w_ref[...], preferred_element_type=jnp.float32
    )

    @pl.when(pl.program_id(2) == pl.num_programs(2) - 1)
    def _():
        o_ref[...] = acc_ref[...].astype(o_ref.dtype)


# ---------------------------------------------------------------------------
# Tile selection (generation-safe: budget fits v5e / v6e / v7x VMEM)
# ---------------------------------------------------------------------------
_VMEM_BUDGET = 24 * 1024 * 1024   # target double-buffered working set
_VMEM_LIMIT = 48 * 1024 * 1024    # scoped VMEM handed to Mosaic (< 64 MiB v7x phys)


def _select_tiles(M, K, N, in_bytes, out_bytes):
    """Return (tm, tn, tk). tk == K means "keep whole K resident" (2-D grid)."""
    tm = M if M <= 512 else 512            # full-dim block or multiple of 8 (512)
    tn = N if N <= 512 else 512            # full-dim block or multiple of 128 (512)

    # v7x has 2 TensorCores: keep at least two parallel (i, j) blocks when we can
    # split along N without breaking the lane-multiple-of-128 block rule.
    if _cdiv(M, tm) * _cdiv(N, tn) < 2 and N > 128:
        tn = max(128, _round_up(_cdiv(N, 2), 128))

    def working_set(tm_, tn_, tk_, k_resident):
        ws = 2 * (tm_ * tk_ + tk_ * tn_) * in_bytes   # double-buffered X, W tiles
        ws += 2 * tm_ * tn_ * out_bytes               # double-buffered output tile
        if not k_resident:
            ws += tm_ * tn_ * 4                       # f32 accumulator scratch
        return ws

    if working_set(tm, tn, K, True) <= _VMEM_BUDGET:
        return tm, tn, K                              # whole K resident, no K grid axis

    # K must be tiled: tk has to be a multiple of 128 (lane dim of the X tile).
    # Prefer a tile that divides K so no padding copy is ever materialized.
    for cand in (1024, 896, 768, 640, 512, 384, 256, 128):
        if K % cand == 0 and working_set(tm, tn, cand, False) <= _VMEM_BUDGET:
            return tm, tn, cand
    tk = 1024
    while tk > 128 and working_set(tm, tn, tk, False) > _VMEM_BUDGET:
        tk -= 128
    return tm, tn, tk


# ---------------------------------------------------------------------------
# Wrapper
# ---------------------------------------------------------------------------
@functools.partial(jax.jit, static_argnames=("tm", "tn", "tk"))
def linear_pallas(x, weight, *, tm=None, tn=None, tk=None):
    """Y = X @ W^T.  X: (..., in_features), W: (out_features, in_features)."""
    *lead, K = x.shape
    N, K_w = weight.shape
    assert K == K_w, "in_features mismatch"

    M = 1
    for d in lead:
        M *= d
    x2d = x.reshape(M, K)
    wT = weight.T                                     # (K, N): paid once, outside the hot loop

    in_bytes = max(jnp.dtype(x.dtype).itemsize, jnp.dtype(weight.dtype).itemsize)
    out_bytes = jnp.dtype(x.dtype).itemsize
    a_tm, a_tn, a_tk = _select_tiles(M, K, N, in_bytes, out_bytes)
    tm = a_tm if tm is None else tm
    tn = a_tn if tn is None else tn
    tk = a_tk if tk is None else min(tk, K)
    tile_k = tk < K

    grid_m = _cdiv(M, tm)
    grid_n = _cdiv(N, tn)

    if tile_k:
        Kp = _round_up(K, tk)
        if Kp != K:
            # Only the contraction axis needs zero padding for correctness;
            # ragged M / N tails are handled by Pallas partial blocks.
            x2d = jnp.pad(x2d, ((0, 0), (0, Kp - K)))
            wT = jnp.pad(wT, ((0, Kp - K), (0, 0)))
        grid = (grid_m, grid_n, Kp // tk)
        in_specs = [
            pl.BlockSpec((tm, tk), lambda i, j, k: (i, k)),   # X tile
            pl.BlockSpec((tk, tn), lambda i, j, k: (k, j)),   # W^T tile (K, N)
        ]
        out_specs = pl.BlockSpec((tm, tn), lambda i, j, k: (i, j))
        scratch_shapes = [pltpu.VMEM((tm, tn), jnp.float32)]
        dims = ("parallel", "parallel", "arbitrary")
        kernel = _linear_kernel_ktiled
    else:
        grid = (grid_m, grid_n)
        in_specs = [
            pl.BlockSpec((tm, K), lambda i, j: (i, 0)),       # full-K X stripe
            pl.BlockSpec((K, tn), lambda i, j: (0, j)),       # full-K W^T stripe
        ]
        out_specs = pl.BlockSpec((tm, tn), lambda i, j: (i, j))
        scratch_shapes = []
        dims = ("parallel", "parallel")
        kernel = _linear_kernel_fullk

    cost = pl.CostEstimate(
        flops=2 * M * N * K,
        transcendentals=0,
        bytes_accessed=(M * K * in_bytes * grid_n     # X streamed once per N-block
                        + K * N * in_bytes * grid_m   # W streamed once per M-block
                        + M * N * out_bytes),
    )

    out = pl.pallas_call(
        kernel,
        out_shape=jax.ShapeDtypeStruct((M, N), x.dtype),
        grid_spec=pltpu.PrefetchScalarGridSpec(
            num_scalar_prefetch=0,
            grid=grid,
            in_specs=in_specs,
            out_specs=out_specs,
            scratch_shapes=scratch_shapes,
        ),
        compiler_params=pltpu.CompilerParams(
            dimension_semantics=dims,
            vmem_limit_bytes=_VMEM_LIMIT,
        ),
        cost_estimate=cost,
    )(x2d, wT)

    return out.reshape(*lead, N)


def init_linear_weight(key, in_features, out_features, dtype=jnp.float32):
    """trunc_normal_(mean=0, std=sqrt(2/(in+out)), a=-3*std, b=3*std)."""
    std = math.sqrt(2.0 / (in_features + out_features))
    w = jax.random.truncated_normal(
        key, -3.0, 3.0, (out_features, in_features), dtype=jnp.float32
    ) * std
    return w.astype(dtype)


if __name__ == "__main__":
    key = jax.random.PRNGKey(0)
    k_w, k_x, k_w2, k_x2 = jax.random.split(key, 4)

    # ---- Test 1: module-style small shape (full-K, 2-D grid path) ----------
    batch, seq, in_features, out_features = 2, 8, 32, 64
    weight = init_linear_weight(k_w, in_features, out_features)
    x = jax.random.normal(k_x, (batch, seq, in_features), dtype=jnp.float32)

    y = jax.block_until_ready(linear_pallas(x, weight))
    y_ref = jnp.einsum("bsi,oi->bso", x, weight)
    assert y.shape == (batch, seq, out_features)
    assert jnp.allclose(y, y_ref, atol=1e-5, rtol=1e-5)

    # ---- Test 2: exercise the K-tiled accumulator path (small, forced tk) --
    in2, out2 = 256, 128
    weight2 = init_linear_weight(k_w2, in2, out2)
    x2 = jax.random.normal(k_x2, (batch, seq, in2), dtype=jnp.float32)

    y2 = jax.block_until_ready(linear_pallas(x2, weight2, tk=128))
    y2_ref = jnp.einsum("bsi,oi->bso", x2, weight2)
    assert y2.shape == (batch, seq, out2)
    assert jnp.allclose(y2, y2_ref, atol=1e-4, rtol=1e-4)

    # TODO(synk): no bias term, matching the reference module (nn.Linear-style
    # weight only); optional bf16 operand cast left to the caller's dtypes.
    print("KERNEL_OK")
</pallas_src>

<mosaic_0001>
module attributes {stable_mosaic.version = 11 : i64} {
  func.func @_linear_kernel_fullk(%arg0: i32, %arg1: i32, %arg2: memref<16x32xf32, #tpu.memory_space<vmem>>, %arg3: memref<32x64xf32, #tpu.memory_space<vmem>>, %arg4: memref<16x64xf32, #tpu.memory_space<vmem>>) attributes {dimension_semantics = [#tpu.dimension_semantics<parallel>, #tpu.dimension_semantics<parallel>], iteration_bounds = array<i64: 1, 1>, scalar_prefetch = 0 : i64, scratch_operands = 0 : i64, tpu.core_type = #tpu.core_type<tc>, window_params = [{transform_indices = @transform_0, window_bounds = array<i64: 16, 32>}, {transform_indices = @transform_1, window_bounds = array<i64: 32, 64>}, {transform_indices = @transform_2, window_bounds = array<i64: 16, 64>}]} {
    %c0 = arith.constant 0 : index
    %c0_0 = arith.constant 0 : index
    %0 = vector.load %arg2[%c0, %c0_0] : memref<16x32xf32, #tpu.memory_space<vmem>>, vector<16x32xf32>
    %c0_1 = arith.constant 0 : index
    %c0_2 = arith.constant 0 : index
    %1 = vector.load %arg3[%c0_1, %c0_2] : memref<32x64xf32, #tpu.memory_space<vmem>>, vector<32x64xf32>
    %cst = arith.constant dense<0.000000e+00> : vector<16x64xf32>
    %2 = tpu.matmul %0, %1, %cst {dimension_numbers = #tpu.dot_dimension_numbers<[1], [0], [0], [1], [0, 0, 1, 1], [], []>} : vector<16x32xf32>, vector<32x64xf32>, vector<16x64xf32> -> vector<16x64xf32>
    %c0_3 = arith.constant 0 : index
    %c0_4 = arith.constant 0 : index
    %3 = vector.load %arg4[%c0_3, %c0_4] : memref<16x64xf32, #tpu.memory_space<vmem>>, vector<16x64xf32>
    tpu.vector_store %arg4[%c0_3, %c0_4], %2 {strides = array<i32>} : memref<16x64xf32, #tpu.memory_space<vmem>>, vector<16x64xf32>,
    return
  }
  func.func @transform_0(%arg0: i32, %arg1: i32) -> (i32, i32) {
    %c0_i32 = arith.constant 0 : i32
    %c0_i32_0 = arith.constant 0 : i32
    return %arg0, %c0_i32 : i32, i32
  }
  func.func @transform_1(%arg0: i32, %arg1: i32) -> (i32, i32) {
    %c0_i32 = arith.constant 0 : i32
    %c0_i32_0 = arith.constant 0 : i32
    return %c0_i32, %arg1 : i32, i32
  }
  func.func @transform_2(%arg0: i32, %arg1: i32) -> (i32, i32) {
    %c0_i32 = arith.constant 0 : i32
    return %arg0, %arg1 : i32, i32
  }
}

</mosaic_0001>

<llo_original>
// kernel: linear_pallas.1
$region0: #{linear_pallas.1}
  #allocation0 [shape = 'u32[]', space=smem, size = 0x4, offset = 0x4, fixed_abs, tag = 'smem constant byte address 0x4 - core index']
  #allocation1 [shape = 'u32[144,128]{1,0:T(1,128)}', space=vmem, size = 0x12000, scoped, tag = 'internal scratch']
  %s0 = inlined_call_operand.hbm [shape: f32[16,32], index: 0, kind: input, shape index: {}]
  %s1 = inlined_call_operand.hbm [shape: f32[32,64], index: 1, kind: input, shape index: {}]
  %s2 = inlined_call_operand.hbm [shape: f32[16,64], index: 2, kind: output, shape index: {}]
  %s3 = sld [smem:[#allocation0]]
  $region26: #{linear_pallas.1} parent=0
    _
  %s5 = ssub.s32 1, %s3
  %s6 = scalar_select 0, %s5, %s3
  $region1: #{linear_pallas.1} parent=0
    #allocation2 [shape = 'u8[8192]{0}', space=vmem, size = 0x2000, scoped, tag = 'input window, operand 0, single buffered']
    #allocation3 [shape = 's32[1]{0}', space=sflag, size = 0x4, scoped, tag = 'scoped memory for linear_pallas.1']
    #allocation4 [shape = 's32[1]{0}', space=sflag, size = 0x4, scoped, tag = 'scoped memory for linear_pallas.1']
    #allocation5 [shape = 'u8[16384]{0}', space=vmem, size = 0x4000, scoped, tag = 'input window, operand 1, single buffered']
    #allocation6 [shape = 's32[1]{0}', space=sflag, size = 0x4, scoped, tag = 'scoped memory for linear_pallas.1']
    #allocation7 [shape = 'u8[8192]{0}', space=vmem, size = 0x2000, scoped, tag = 'output window, operand 0, single buffered']
    %7 = vsyncpa [#allocation3], 0
    %8 = vsyncpa [#allocation6], 0
    %9 = vsyncpa [#allocation4], 0
    // Predicated region
    $region2: #{linear_pallas.1} parent=1 // pred_check
      _
    $region3: #{linear_pallas.1} parent=1 // pred_check_branch
      %11 = sbr.rel (0) target = $region5
    $region4: #{linear_pallas.1} parent=1 // pred_region
      %s13 = ssub.s32 256, 256
      %14 = vsyncadd [#allocation3], %s13
      %s15 = sshll.u32 [#allocation2], 4
      %s16 = int_to_ptr.vmem [resolvable:$true] %s15
      %21 = dma.hbm_to_vmem [thread:$0]  %s0, 256, %s16, [#allocation3], 128, 128, 8
    $region5: #{linear_pallas.1} parent=1 // pred_fallthru
      _
    // Predicated region
    $region6: #{linear_pallas.1} parent=1 // pred_check
      _
    $region7: #{linear_pallas.1} parent=1 // pred_check_branch
      %23 = sbr.rel (0) target = $region9
    $region8: #{linear_pallas.1} parent=1 // pred_region
      %s25 = ssub.s32 512, 512
      %26 = vsyncadd [#allocation6], %s25
      %s27 = sshll.u32 [#allocation5], 4
      %s28 = int_to_ptr.vmem [resolvable:$true] %s27
      %33 = dma.hbm_to_vmem [thread:$0]  %s1, 512, %s28, [#allocation6], 128, 128, 8
    $region9: #{linear_pallas.1} parent=1 // pred_fallthru
      _
    // Predicated region
    $region10: #{linear_pallas.1} parent=1 // pred_check
      _
    $region11: #{linear_pallas.1} parent=1 // pred_check_branch
      %35 = sbr.rel (0) target = $region13
    $region12: #{linear_pallas.1} parent=1 // pred_region
      %36 = dma.done [#allocation3], 256
    $region13: #{linear_pallas.1} parent=1 // pred_fallthru
      _
    // Predicated region
    $region14: #{linear_pallas.1} parent=1 // pred_check
      _
    $region15: #{linear_pallas.1} parent=1 // pred_check_branch
      %38 = sbr.rel (0) target = $region17
    $region16: #{linear_pallas.1} parent=1 // pred_region
      %39 = dma.done [#allocation6], 512
    $region17: #{linear_pallas.1} parent=1 // pred_fallthru
      _
    %v40 = vld [vmem:[#allocation2] sm:$0xff]
    %v41 = vld [vmem:[#allocation2 + $0x8] sm:$0xff]
    %v42 = vld [vmem:[#allocation5] sm:$0xff]
    %v43 = vld [vmem:[#allocation5 + $0x8] sm:$0xff]
    %v44 = vld [vmem:[#allocation5 + $0x10] sm:$0xff]
    %v45 = vld [vmem:[#allocation5 + $0x18] sm:$0xff]
    %vm46 = vcmask 261120
    %v48 = vsel %vm46, %v40, 0
    %v51 = vsel %vm46, %v41, 0
    %53 = vmatprep.subr.mxu0 0.0
    %54 = vmatpush1.msra.mxu0 %v42
    %55 = vmatprep.subr.mxu0 0.0
    %56 = vmatpush1.msra.mxu0 %v43
    %57 = vmatprep.subr.mxu0 0.0
    %58 = vmatpush1.msra.mxu0 %v44
    %59 = vmatprep.subr.mxu0 0.0
    %60 = vmatpush1.msra.mxu0 %v45
    %61 = vmatprep.subr.mxu0 0.0
    %62 = vmatpush1.msra.mxu0 0.0
    %63 = vmatprep.subr.mxu0 0.0
    %64 = vmatpush1.msra.mxu0 0.0
    %65 = vmatprep.subr.mxu0 0.0
    %66 = vmatpush1.msra.mxu0 0.0
    %67 = vmatprep.subr.mxu0 0.0
    %68 = vmatpush1.msra.mxu0 0.0
    %69 = vmatprep.subr.mxu0 0.0
    %70 = vmatpush1.msra.mxu0 0.0
    %71 = vmatprep.subr.mxu0 0.0
    %72 = vmatpush1.msra.mxu0 0.0
    %73 = vmatprep.subr.mxu0 0.0
    %74 = vmatpush1.msra.mxu0 0.0
    %75 = vmatprep.subr.mxu0 0.0
    %76 = vmatpush1.msra.mxu0 0.0
    %77 = vmatprep.subr.mxu0 0.0
    %78 = vmatpush1.msra.mxu0 0.0
    %79 = vmatprep.subr.mxu0 0.0
    %80 = vmatpush1.msra.mxu0 0.0
    %81 = vmatprep.subr.mxu0 0.0
    %82 = vmatpush1.msra.mxu0 0.0
    %83 = vmatprep.subr.mxu0 0.0
    %84 = vmatpush1.msra.mxu0 0.0
    %85 = vmatprep.subr.mxu0 0.0
    %86 = vmatpush1.msra.mxu0 0.0
    %87 = vmatprep.subr.mxu0 0.0
    %88 = vmatpush1.msra.mxu0 0.0
    %89 = vmatprep.subr.mxu0 0.0
    %90 = vmatpush1.msra.mxu0 0.0
    %91 = vmatprep.subr.mxu0 0.0
    %92 = vmatpush1.msra.mxu0 0.0
    %93 = vmatprep.subr.mxu0 0.0
    %94 = vmatpush1.msra.mxu0 0.0
    %95 = vmatprep.subr.mxu0 0.0
    %96 = vmatpush1.msra.mxu0 0.0
    %97 = vmatprep.subr.mxu0 0.0
    %98 = vmatpush1.msra.mxu0 0.0
    %99 = vmatprep.subr.mxu0 0.0
    %100 = vmatpush1.msra.mxu0 0.0
    %101 = vmatprep.subr.mxu0 0.0
    %102 = vmatpush1.msra.mxu0 0.0
    %103 = vmatprep.subr.mxu0 0.0
    %104 = vmatpush1.msra.mxu0 0.0
    %105 = vmatprep.subr.mxu0 0.0
    %106 = vmatpush1.msra.mxu0 0.0
    %107 = vmatprep.subr.mxu0 0.0
    %108 = vmatpush1.msra.mxu0 0.0
    %109 = vmatprep.subr.mxu0 0.0
    %110 = vmatpush1.msra.mxu0 0.0
    %111 = vmatprep.subr.mxu0 0.0
    %112 = vmatpush1.msra.mxu0 0.0
    %113 = vmatprep.subr.mxu0 0.0
    %114 = vmatpush1.msra.mxu0 0.0
    %115 = vmatprep.subr.mxu0 0.0
    %116 = vmatpush1.msra.mxu0 0.0
    %117 = vmatprep.mubr.f32.mxu0 0.0
    %118 = vmatmul.mubr.f32.gmra.mrb[0].mxu0 %v48
    %v119 = vpop.f32.mrb[0].mxu0
    %v120 = vadd.f32 0.0, %v119
    %v121 = vpop.f32.mrb[0].mxu0
    %122 = vmatprep.mubr.f32.mxu0 0.0
    %123 = vmatmul.mubr.f32.gmra.mrb[0].mxu0 %v51
    %v124 = vpop.f32.mrb[0].mxu0
    %v125 = vadd.f32 0.0, %v124
    %v126 = vpop.f32.mrb[0].mxu0
    %127 = vdwg.mxu0
    %vm128 = vcmask 523264
    %129 = vst.msk [vmem:[#allocation7] sm:$0xff] %vm128, %v120
    %130 = vst.msk [vmem:[#allocation7 + $0x8] sm:$0xff] %vm128, %v125
    // Predicated region
    $region18: #{linear_pallas.1} parent=1 // pred_check
      _
    $region19: #{linear_pallas.1} parent=1 // pred_check_branch
      %132 = sbr.rel (0) target = $region21
    $region20: #{linear_pallas.1} parent=1 // pred_region
      %s134 = ssub.s32 256, 256
      %135 = vsyncadd [#allocation4], %s134
      %s136 = sshll.u32 [#allocation7], 4
      %s137 = int_to_ptr.vmem [resolvable:$true] %s136
      %142 = dma.vmem_to_hbm [thread:$0]  %s137, 256, %s2, [#allocation4], 128, 128, 8
    $region21: #{linear_pallas.1} parent=1 // pred_fallthru
      _
    // Predicated region
    $region22: #{linear_pallas.1} parent=1 // pred_check
      _
    $region23: #{linear_pallas.1} parent=1 // pred_check_branch
      %144 = sbr.rel (0) target = $region25
    $region24: #{linear_pallas.1} parent=1 // pred_region
      %145 = dma.done [#allocation4], 256
    $region25: #{linear_pallas.1} parent=1 // pred_fallthru
      _
    %146 = vsyncpa [#allocation3], 1
    %147 = vsyncpa [#allocation6], 1
    %148 = vsyncpa [#allocation4], 1

</llo_original>
